<compile_context>
chip_gen: v7x
topology: tpu7x:2x2x1
jax: 0.10.0
libtpu: 0.0.40
codegen_flags: <defaults>
</compile_context>

<pallas_src>
import jax
import jax.numpy as jnp
from jax import lax
from jax.experimental import pallas as pl
from jax.experimental.pallas import tpu as pltpu


def ffn_kernel(x_ref, w1_ref, b1_ref, w2_ref, b2_ref, o_ref, acc_ref):
    f = pl.program_id(1)

    @pl.when(f == 0)
    def _():
        acc_ref[...] = jnp.zeros_like(acc_ref)

    # h = relu(x @ W1^T + b1) for this d_ff tile.
    # x_ref: (tm, d_model); w1_ref: (tf, d_model)  (PyTorch [out, in] layout)
    h = lax.dot_general(
        x_ref[...], w1_ref[...],
        dimension_numbers=(((1,), (1,)), ((), ())),
        preferred_element_type=jnp.float32)               # (tm, tf) f32
    h = jnp.maximum(h + b1_ref[...], 0.0)

    # acc += h @ W2^T for this d_ff tile.
    # w2_ref: (d_model, tf)  (PyTorch [out, in] layout); contract over tf.
    acc_ref[...] += lax.dot_general(
        h.astype(w2_ref.dtype), w2_ref[...],
        dimension_numbers=(((1,), (1,)), ((), ())),
        preferred_element_type=jnp.float32)               # (tm, d_model) f32

    @pl.when(f == pl.num_programs(1) - 1)
    def _():
        o_ref[...] = (acc_ref[...] + b2_ref[...]).astype(o_ref.dtype)


def _round_up(x, m):
    return (x + m - 1) // m * m


def feed_forward(x, w1, b1, w2, b2, *,
                 tm_target=256, tf_target=512,
                 compute_dtype=jnp.bfloat16):
    """Fused fc2(relu(fc1(x))).

    x : [batch, seq, d_model]
    w1: [d_ff, d_model], b1: [d_ff]      (PyTorch nn.Linear layout)
    w2: [d_model, d_ff], b2: [d_model]
    """
    batch, seq, d_model = x.shape
    d_ff = w1.shape[0]
    m = batch * seq
    out_dtype = x.dtype

    # --- choose lane/sublane-friendly tiles (full-extent blocks for toy shapes)
    if m >= tm_target:
        tm = tm_target
        m_p = _round_up(m, tm)
    else:
        tm = m                      # single full-extent token tile
        m_p = m
    if d_ff >= tf_target:
        tf = tf_target
        dff_p = _round_up(d_ff, tf)
    else:
        tf = d_ff
        dff_p = d_ff
    # d_model is kept whole in every block (resident feature axis).
    # TODO(synk): pad d_model to a multiple of 128 for non-aligned model dims
    #             (perf-only concern; correctness does not require it).

    x2d = x.reshape(m, d_model).astype(compute_dtype)
    w1c = w1.astype(compute_dtype)
    w2c = w2.astype(compute_dtype)
    b1r = b1.astype(jnp.float32).reshape(1, d_ff)
    b2r = b2.astype(jnp.float32).reshape(1, d_model)

    # Zero-padding is exact for this op: relu(x @ 0 + 0) = 0 and 0 @ W2 = 0,
    # and padded token rows are sliced off below.
    if m_p != m:
        x2d = jnp.pad(x2d, ((0, m_p - m), (0, 0)))
    if dff_p != d_ff:
        pad = dff_p - d_ff
        w1c = jnp.pad(w1c, ((0, pad), (0, 0)))
        b1r = jnp.pad(b1r, ((0, 0), (0, pad)))
        w2c = jnp.pad(w2c, ((0, 0), (0, pad)))

    grid = (m_p // tm, dff_p // tf)

    # Explicit VMEM budget: double-buffered inputs/outputs + f32 accumulator,
    # 2x margin, capped under v7x's 64 MiB per-TC VMEM.
    cb = jnp.dtype(compute_dtype).itemsize
    ob = jnp.dtype(out_dtype).itemsize
    need = (2 * (tm * d_model * cb            # x tile
                 + tf * d_model * cb          # W1 tile
                 + d_model * tf * cb          # W2 tile
                 + tf * 4 + d_model * 4       # biases
                 + tm * d_model * ob)         # out tile
            + tm * d_model * 4)               # f32 accumulator
    vmem_limit = int(min(48 * 1024 * 1024, max(2 * need, 8 * 1024 * 1024)))

    out2d = pl.pallas_call(
        ffn_kernel,
        out_shape=jax.ShapeDtypeStruct((m_p, d_model), out_dtype),
        grid_spec=pltpu.PrefetchScalarGridSpec(
            num_scalar_prefetch=0,
            grid=grid,
            in_specs=[
                pl.BlockSpec((tm, d_model), lambda i, f: (i, 0)),   # x
                pl.BlockSpec((tf, d_model), lambda i, f: (f, 0)),   # W1
                pl.BlockSpec((1, tf),       lambda i, f: (0, f)),   # b1
                pl.BlockSpec((d_model, tf), lambda i, f: (0, f)),   # W2
                pl.BlockSpec((1, d_model),  lambda i, f: (0, 0)),   # b2
            ],
            out_specs=pl.BlockSpec((tm, d_model), lambda i, f: (i, 0)),
            scratch_shapes=[pltpu.VMEM((tm, d_model), jnp.float32)],
        ),
        compiler_params=pltpu.CompilerParams(
            dimension_semantics=("parallel", "arbitrary"),
            vmem_limit_bytes=vmem_limit,
        ),
    )(x2d, w1c, b1r, w2c, b2r)

    if m_p != m:
        out2d = out2d[:m]
    return out2d.reshape(batch, seq, d_model)


if __name__ == "__main__":
    # Small shapes consistent with the module: tokens of width d_model.
    batch, seq, d_model, d_ff = 2, 8, 32, 64

    key = jax.random.PRNGKey(0)
    kx, kw1, kb1, kw2, kb2 = jax.random.split(key, 5)

    # Deterministic init mimicking nn.Linear's U(-1/sqrt(fan_in), 1/sqrt(fan_in)).
    bound1 = 1.0 / (d_model ** 0.5)
    bound2 = 1.0 / (d_ff ** 0.5)
    w1 = jax.random.uniform(kw1, (d_ff, d_model), jnp.float32, -bound1, bound1)
    b1 = jax.random.uniform(kb1, (d_ff,), jnp.float32, -bound1, bound1)
    w2 = jax.random.uniform(kw2, (d_model, d_ff), jnp.float32, -bound2, bound2)
    b2 = jax.random.uniform(kb2, (d_model,), jnp.float32, -bound2, bound2)

    x = jax.random.normal(kx, (batch, seq, d_model), jnp.float32)

    out = feed_forward(x, w1, b1, w2, b2)
    out = jax.block_until_ready(out)

    # Pure-JAX fp32 reference. The kernel computes in bf16 with f32
    # accumulation, so the tolerance is correspondingly relaxed.
    ref = jnp.maximum(x @ w1.T + b1, 0.0) @ w2.T + b2
    assert out.shape == (batch, seq, d_model)
    assert jnp.allclose(out, ref, atol=3e-2, rtol=3e-2), (
        float(jnp.max(jnp.abs(out - ref))))

    print("KERNEL_OK")
</pallas_src>

<mosaic_0001>
module attributes {stable_mosaic.version = 11 : i64} {
  func.func @ffn_kernel(%arg0: i32, %arg1: i32, %arg2: memref<16x32xbf16, #tpu.memory_space<vmem>>, %arg3: memref<64x32xbf16, #tpu.memory_space<vmem>>, %arg4: memref<1x64xf32, #tpu.memory_space<vmem>>, %arg5: memref<32x64xbf16, #tpu.memory_space<vmem>>, %arg6: memref<1x32xf32, #tpu.memory_space<vmem>>, %arg7: memref<16x32xf32, #tpu.memory_space<vmem>>, %arg8: memref<16x32xf32, #tpu.memory_space<vmem>>) attributes {dimension_semantics = [#tpu.dimension_semantics<parallel>, #tpu.dimension_semantics<arbitrary>], iteration_bounds = array<i64: 1, 1>, scalar_prefetch = 0 : i64, scratch_operands = 1 : i64, tpu.core_type = #tpu.core_type<tc>, window_params = [{transform_indices = @transform_0, window_bounds = array<i64: 16, 32>}, {transform_indices = @transform_1, window_bounds = array<i64: 64, 32>}, {transform_indices = @transform_2, window_bounds = array<i64: 1, 64>}, {transform_indices = @transform_3, window_bounds = array<i64: 32, 64>}, {pipeline_mode = #tpu.pipeline_mode<synchronous>, transform_indices = @transform_4, window_bounds = array<i64: 1, 32>}, {transform_indices = @transform_5, window_bounds = array<i64: 16, 32>}]} {
    %c0_i32 = arith.constant 0 : i32
    %0 = arith.cmpi eq, %arg1, %c0_i32 : i32
    %1 = arith.extui %0 : i1 to i32
    %c0_i32_0 = arith.constant 0 : i32
    %2 = arith.cmpi ne, %1, %c0_i32_0 : i32
    scf.if %2 {
      %cst_16 = arith.constant 0.000000e+00 : f32
      %20 = vector.broadcast %cst_16 : f32 to vector<16x32xf32>
      %c0_17 = arith.constant 0 : index
      %c0_18 = arith.constant 0 : index
      %21 = vector.load %arg8[%c0_17, %c0_18] : memref<16x32xf32, #tpu.memory_space<vmem>>, vector<16x32xf32>
      tpu.vector_store %arg8[%c0_17, %c0_18], %20 {strides = array<i32>} : memref<16x32xf32, #tpu.memory_space<vmem>>, vector<16x32xf32>,
    } else {
    }
    %c0 = arith.constant 0 : index
    %c0_1 = arith.constant 0 : index
    %3 = vector.load %arg2[%c0, %c0_1] : memref<16x32xbf16, #tpu.memory_space<vmem>>, vector<16x32xbf16>
    %c0_2 = arith.constant 0 : index
    %c0_3 = arith.constant 0 : index
    %4 = vector.load %arg3[%c0_2, %c0_3] : memref<64x32xbf16, #tpu.memory_space<vmem>>, vector<64x32xbf16>
    %cst = arith.constant dense<0.000000e+00> : vector<16x64xf32>
    %5 = tpu.matmul %3, %4, %cst {dimension_numbers = #tpu.dot_dimension_numbers<[1], [1], [0], [0], [0, 0, 1, 0], [], []>} : vector<16x32xbf16>, vector<64x32xbf16>, vector<16x64xf32> -> vector<16x64xf32>
    %c0_4 = arith.constant 0 : index
    %c0_5 = arith.constant 0 : index
    %6 = vector.load %arg4[%c0_4, %c0_5] : memref<1x64xf32, #tpu.memory_space<vmem>>, vector<1x64xf32>
    %7 = vector.broadcast %6 : vector<1x64xf32> to vector<16x64xf32>
    %8 = arith.addf %5, %7 : vector<16x64xf32>
    %cst_6 = arith.constant 0.000000e+00 : f32
    %9 = vector.broadcast %cst_6 : f32 to vector<16x64xf32>
    %10 = arith.maximumf %8, %9 : vector<16x64xf32>
    %c0_7 = arith.constant 0 : index
    %c0_8 = arith.constant 0 : index
    %11 = vector.load %arg8[%c0_7, %c0_8] : memref<16x32xf32, #tpu.memory_space<vmem>>, vector<16x32xf32>
    %12 = arith.truncf %10 : vector<16x64xf32> to vector<16x64xbf16>
    %c0_9 = arith.constant 0 : index
    %c0_10 = arith.constant 0 : index
    %13 = vector.load %arg5[%c0_9, %c0_10] : memref<32x64xbf16, #tpu.memory_space<vmem>>, vector<32x64xbf16>
    %cst_11 = arith.constant dense<0.000000e+00> : vector<16x32xf32>
    %14 = tpu.matmul %12, %13, %cst_11 {dimension_numbers = #tpu.dot_dimension_numbers<[1], [1], [0], [0], [0, 0, 1, 0], [], []>} : vector<16x64xbf16>, vector<32x64xbf16>, vector<16x32xf32> -> vector<16x32xf32>
    %15 = arith.addf %11, %14 : vector<16x32xf32>
    %c0_12 = arith.constant 0 : index
    %c0_13 = arith.constant 0 : index
    %16 = vector.load %arg8[%c0_12, %c0_13] : memref<16x32xf32, #tpu.memory_space<vmem>>, vector<16x32xf32>
    tpu.vector_store %arg8[%c0_12, %c0_13], %15 {strides = array<i32>} : memref<16x32xf32, #tpu.memory_space<vmem>>, vector<16x32xf32>,
    %c0_i32_14 = arith.constant 0 : i32
    %17 = arith.cmpi eq, %arg1, %c0_i32_14 : i32
    %18 = arith.extui %17 : i1 to i32
    %c0_i32_15 = arith.constant 0 : i32
    %19 = arith.cmpi ne, %18, %c0_i32_15 : i32
    scf.if %19 {
      %c0_16 = arith.constant 0 : index
      %c0_17 = arith.constant 0 : index
      %20 = vector.load %arg8[%c0_16, %c0_17] : memref<16x32xf32, #tpu.memory_space<vmem>>, vector<16x32xf32>
      %c0_18 = arith.constant 0 : index
      %c0_19 = arith.constant 0 : index
      %21 = vector.load %arg6[%c0_18, %c0_19] : memref<1x32xf32, #tpu.memory_space<vmem>>, vector<1x32xf32>
      %22 = vector.broadcast %21 : vector<1x32xf32> to vector<16x32xf32>
      %23 = arith.addf %20, %22 : vector<16x32xf32>
      %c0_20 = arith.constant 0 : index
      %c0_21 = arith.constant 0 : index
      %24 = vector.load %arg7[%c0_20, %c0_21] : memref<16x32xf32, #tpu.memory_space<vmem>>, vector<16x32xf32>
      tpu.vector_store %arg7[%c0_20, %c0_21], %23 {strides = array<i32>} : memref<16x32xf32, #tpu.memory_space<vmem>>, vector<16x32xf32>,
    } else {
    }
    return
  }
  func.func @transform_0(%arg0: i32, %arg1: i32) -> (i32, i32) {
    %c0_i32 = arith.constant 0 : i32
    %c0_i32_0 = arith.constant 0 : i32
    return %arg0, %c0_i32 : i32, i32
  }
  func.func @transform_1(%arg0: i32, %arg1: i32) -> (i32, i32) {
    %c0_i32 = arith.constant 0 : i32
    %c0_i32_0 = arith.constant 0 : i32
    return %arg1, %c0_i32 : i32, i32
  }
  func.func @transform_2(%arg0: i32, %arg1: i32) -> (i32, i32) {
    %c0_i32 = arith.constant 0 : i32
    %c0_i32_0 = arith.constant 0 : i32
    return %c0_i32, %arg1 : i32, i32
  }
  func.func @transform_3(%arg0: i32, %arg1: i32) -> (i32, i32) {
    %c0_i32 = arith.constant 0 : i32
    %c0_i32_0 = arith.constant 0 : i32
    return %c0_i32, %arg1 : i32, i32
  }
  func.func @transform_4(%arg0: i32, %arg1: i32) -> (i32, i32) {
    %c0_i32 = arith.constant 0 : i32
    %c0_i32_0 = arith.constant 0 : i32
    %c0_i32_1 = arith.constant 0 : i32
    return %c0_i32, %c0_i32_0 : i32, i32
  }
  func.func @transform_5(%arg0: i32, %arg1: i32) -> (i32, i32) {
    %c0_i32 = arith.constant 0 : i32
    %c0_i32_0 = arith.constant 0 : i32
    return %arg0, %c0_i32 : i32, i32
  }
}

</mosaic_0001>

<llo_original>
// kernel: tpu_custom_call.1
$region0: #{tpu_custom_call.1}
  #allocation0 [shape = 'u32[]', space=smem, size = 0x4, offset = 0x4, fixed_abs, tag = 'smem constant byte address 0x4 - core index']
  #allocation1 [shape = 'u32[144,128]{1,0:T(1,128)}', space=vmem, size = 0x12000, scoped, tag = 'internal scratch']
  #allocation2 [shape = 'f32[16,32]{1,0:T(8,128)}', space=vmem, size = 0x2000, scoped, tag = 'scratch operand']
  %s0 = inlined_call_operand.vmem [shape: bf16[16,32], index: 0, kind: input, shape index: {}]
  %s1 = inlined_call_operand.vmem [shape: bf16[64,32], index: 1, kind: input, shape index: {}]
  %s2 = inlined_call_operand.vmem [shape: f32[1,64], index: 2, kind: input, shape index: {}]
  %s3 = inlined_call_operand.vmem [shape: bf16[32,64], index: 3, kind: input, shape index: {}]
  %s4 = inlined_call_operand.vmem [shape: f32[1,32], index: 4, kind: input, shape index: {}]
  %s5 = inlined_call_operand.hbm [shape: f32[16,32], index: 5, kind: output, shape index: {}]
  %s6 = sld [smem:[#allocation0]]
  $region38: #{tpu_custom_call.1} parent=0
    _
  %s8 = ssub.s32 1, %s6
  %s9 = scalar_select 0, %s8, %s6
  $region1: #{tpu_custom_call.1} parent=0
    #allocation3 [shape = 'u8[8192]{0}', space=vmem, size = 0x2000, scoped, tag = 'output window, operand 0, single buffered']
    #allocation4 [shape = 's32[1]{0}', space=sflag, size = 0x4, scoped, tag = 'scoped memory for tpu_custom_call.1']
    %10 = vsyncpa [#allocation4], 0
    // Predicated region
    $region2: #{tpu_custom_call.1} parent=1 // pred_check
      _
    $region3: #{tpu_custom_call.1} parent=1 // pred_check_branch
      %12 = sbr.rel (0) target = $region5
    $region4: #{tpu_custom_call.1} parent=1 // pred_region
      _
    $region5: #{tpu_custom_call.1} parent=1 // pred_fallthru
      _
    // Predicated region
    $region6: #{tpu_custom_call.1} parent=1 // pred_check
      _
    $region7: #{tpu_custom_call.1} parent=1 // pred_check_branch
      %14 = sbr.rel (0) target = $region9
    $region8: #{tpu_custom_call.1} parent=1 // pred_region
      _
    $region9: #{tpu_custom_call.1} parent=1 // pred_fallthru
      _
    // Predicated region
    $region10: #{tpu_custom_call.1} parent=1 // pred_check
      _
    $region11: #{tpu_custom_call.1} parent=1 // pred_check_branch
      %16 = sbr.rel (0) target = $region13
    $region12: #{tpu_custom_call.1} parent=1 // pred_region
      _
    $region13: #{tpu_custom_call.1} parent=1 // pred_fallthru
      _
    // Predicated region
    $region14: #{tpu_custom_call.1} parent=1 // pred_check
      _
    $region15: #{tpu_custom_call.1} parent=1 // pred_check_branch
      %18 = sbr.rel (0) target = $region17
    $region16: #{tpu_custom_call.1} parent=1 // pred_region
      _
    $region17: #{tpu_custom_call.1} parent=1 // pred_fallthru
      _
    // Predicated region
    $region18: #{tpu_custom_call.1} parent=1 // pred_check
      _
    $region19: #{tpu_custom_call.1} parent=1 // pred_check_branch
      %20 = sbr.rel (0) target = $region21
    $region20: #{tpu_custom_call.1} parent=1 // pred_region
      _
    $region21: #{tpu_custom_call.1} parent=1 // pred_fallthru
      _
    %p22 = scmp.eq.s32.totalorder 0, 0
    // Predicated region
    $region22: #{tpu_custom_call.1} parent=1 // pred_check
      %p23 = pneg %p22
    $region23: #{tpu_custom_call.1} parent=1 // pred_check_branch
      %25 = sbr.rel (%p23) target = $region25
    $region24: #{tpu_custom_call.1} parent=1 // pred_region
      %vm26 = vcmask 261120
      %27 = vst.msk [vmem:[#allocation2] sm:$0xff] %vm26, 0.0
      %28 = vst.msk [vmem:[#allocation2 + $0x8] sm:$0xff] %vm26, 0.0
    $region25: #{tpu_custom_call.1} parent=1 // pred_fallthru
      _
    %v29 = vld [vmem:[%s0] sm:$0xf]
    %v30 = vld [vmem:[%s0 + $0x4] sm:$0xf]
    %v31 = vld [vmem:[%s1] sm:$0xf]
    %v32 = vld [vmem:[%s1 + $0x4] sm:$0xf]
    %v33 = vld [vmem:[%s1 + $0x8] sm:$0xf]
    %v34 = vld [vmem:[%s1 + $0xc] sm:$0xf]
    %v35 = vld [vmem:[%s1 + $0x10] sm:$0xf]
    %v36 = vld [vmem:[%s1 + $0x14] sm:$0xf]
    %v37 = vld [vmem:[%s1 + $0x18] sm:$0xf]
    %v38 = vld [vmem:[%s1 + $0x1c] sm:$0xf]
    %v39 = vld [vmem:[%s2] sm:$0x1]
    %v41 = vlaneseq
    %v42 = vshrl.u32 %v41, 7
    %v43 = vsub.s32 0, %v42
    %v44 = vrot.slane %v39, %v43
    %v48 = vunpack.c.l.b16 %v29
    %v49 = vunpack.c.l.b16 %v30
    %v50 = vpack.c.b16 %v49, %v48
    %v59 = vunpack.c.l.b16 %v31
    %v60 = vunpack.c.l.b16 %v32
    %v61 = vunpack.c.l.b16 %v33
    %v62 = vunpack.c.l.b16 %v34
    %v63 = vunpack.c.l.b16 %v35
    %v64 = vunpack.c.l.b16 %v36
    %v65 = vunpack.c.l.b16 %v37
    %v66 = vunpack.c.l.b16 %v38
    %v67 = vpack.c.b16 %v60, %v59
    %v68 = vpack.c.b16 %v62, %v61
    %v69 = vpack.c.b16 %v64, %v63
    %v70 = vpack.c.b16 %v66, %v65
    %vm71 = vcmask 261120
    %v73 = vsel %vm71, %v50, 0
    %v76 = vsel %vm71, %v67, 0
    %v79 = vsel %vm71, %v68, 0
    %v82 = vsel %vm71, %v69, 0
    %v85 = vsel %vm71, %v70, 0
    %87 = vmatprep.subr.bf16.mxu0 0
    %88 = vmatpush1.bf16.xpose.msra.mxu0 %v76
    %89 = vmatprep.subr.bf16.mxu0 0
    %90 = vmatpush1.bf16.xpose.msra.mxu0 %v79
    %91 = vmatprep.subr.bf16.mxu0 0
    %92 = vmatpush1.bf16.xpose.msra.mxu0 %v82
    %93 = vmatprep.subr.bf16.mxu0 0
    %94 = vmatpush1.bf16.xpose.msra.mxu0 %v85
    %95 = vmatprep.subr.bf16.mxu0 0
    %96 = vmatpush1.bf16.xpose.msra.mxu0 0
    %97 = vmatprep.subr.bf16.mxu0 0
    %98 = vmatpush1.bf16.xpose.msra.mxu0 0
    %99 = vmatprep.subr.bf16.mxu0 0
    %100 = vmatpush1.bf16.xpose.msra.mxu0 0
    %101 = vmatprep.subr.bf16.mxu0 0
    %102 = vmatpush1.bf16.xpose.msra.mxu0 0
    %103 = vmatprep.subr.bf16.mxu0 0
    %104 = vmatpush1.bf16.xpose.msra.mxu0 0
    %105 = vmatprep.subr.bf16.mxu0 0
    %106 = vmatpush1.bf16.xpose.msra.mxu0 0
    %107 = vmatprep.subr.bf16.mxu0 0
    %108 = vmatpush1.bf16.xpose.msra.mxu0 0
    %109 = vmatprep.subr.bf16.mxu0 0
    %110 = vmatpush1.bf16.xpose.msra.mxu0 0
    %111 = vmatprep.subr.bf16.mxu0 0
    %112 = vmatpush1.bf16.xpose.msra.mxu0 0
    %113 = vmatprep.subr.bf16.mxu0 0
    %114 = vmatpush1.bf16.xpose.msra.mxu0 0
    %115 = vmatprep.subr.bf16.mxu0 0
    %116 = vmatpush1.bf16.xpose.msra.mxu0 0
    %117 = vmatprep.subr.bf16.mxu0 0
    %118 = vmatpush1.bf16.xpose.msra.mxu0 0
    %119 = vmatprep.mubr.bf16.mxu0 0
    %120 = vmatmul.mubr.bf16.gmra.mrb[0].mxu0 %v73
    %v121 = vpop.f32.mrb[0].mxu0
    %v122 = vadd.f32 %v44, %v121
    %v123 = vpop.f32.mrb[0].mxu0
    %v124 = vpop.f32.mrb[0].mxu0
    %v125 = vadd.f32 %v44, %v124
    %v126 = vpop.f32.mrb[0].mxu0
    %127 = vdwg.mxu0
    %v128 = vmax.f32 %v122, 0.0
    %v129 = vmax.f32 %v125, 0.0
    %v130 = vld [vmem:[#allocation2] sm:$0xff]
    %v131 = vld [vmem:[#allocation2 + $0x8] sm:$0xff]
    %v132 = vpack.c.bf16 %v129, %v128
    %v133 = vld [vmem:[%s3] sm:$0xf]
    %v134 = vld [vmem:[%s3 + $0x4] sm:$0xf]
    %v135 = vld [vmem:[%s3 + $0x8] sm:$0xf]
    %v136 = vld [vmem:[%s3 + $0xc] sm:$0xf]
    %v141 = vunpack.c.l.b16 %v133
    %v142 = vunpack.c.l.b16 %v134
    %v143 = vunpack.c.l.b16 %v135
    %v144 = vunpack.c.l.b16 %v136
    %v145 = vpack.c.b16 %v142, %v141
    %v146 = vpack.c.b16 %v144, %v143
    %vm147 = vcmask 523264
    %v149 = vsel %vm147, %v132, 0
    %v152 = vsel %vm147, %v145, 0
    %v155 = vsel %vm147, %v146, 0
    %157 = vmatprep.subr.bf16.mxu0 0
    %158 = vmatpush1.bf16.xpose.msra.mxu0 %v152
    %159 = vmatprep.subr.bf16.mxu0 0
    %160 = vmatpush1.bf16.xpose.msra.mxu0 %v155
    %161 = vmatprep.subr.bf16.mxu0 0
    %162 = vmatpush1.bf16.xpose.msra.mxu0 0
    %163 = vmatprep.subr.bf16.mxu0 0
    %164 = vmatpush1.bf16.xpose.msra.mxu0 0
    %165 = vmatprep.subr.bf16.mxu0 0
    %166 = vmatpush1.bf16.xpose.msra.mxu0 0
    %167 = vmatprep.subr.bf16.mxu0 0
    %168 = vmatpush1.bf16.xpose.msra.mxu0 0
    %169 = vmatprep.subr.bf16.mxu0 0
    %170 = vmatpush1.bf16.xpose.msra.mxu0 0
    %171 = vmatprep.subr.bf16.mxu0 0
    %172 = vmatpush1.bf16.xpose.msra.mxu0 0
    %173 = vmatprep.subr.bf16.mxu0 0
    %174 = vmatpush1.bf16.xpose.msra.mxu0 0
    %175 = vmatprep.subr.bf16.mxu0 0
    %176 = vmatpush1.bf16.xpose.msra.mxu0 0
    %177 = vmatprep.subr.bf16.mxu0 0
    %178 = vmatpush1.bf16.xpose.msra.mxu0 0
    %179 = vmatprep.subr.bf16.mxu0 0
    %180 = vmatpush1.bf16.xpose.msra.mxu0 0
    %181 = vmatprep.subr.bf16.mxu0 0
    %182 = vmatpush1.bf16.xpose.msra.mxu0 0
    %183 = vmatprep.subr.bf16.mxu0 0
    %184 = vmatpush1.bf16.xpose.msra.mxu0 0
    %185 = vmatprep.subr.bf16.mxu0 0
    %186 = vmatpush1.bf16.xpose.msra.mxu0 0
    %187 = vmatprep.subr.bf16.mxu0 0
    %188 = vmatpush1.bf16.xpose.msra.mxu0 0
    %189 = vmatprep.mubr.bf16.mxu0 0
    %190 = vmatmul.mubr.bf16.gmra.mrb[0].mxu0 %v149
    %v191 = vpop.f32.mrb[0].mxu0
    %v192 = vadd.f32 0.0, %v191
    %v193 = vpop.f32.mrb[0].mxu0
    %v194 = vpop.f32.mrb[0].mxu0
    %v195 = vadd.f32 0.0, %v194
    %v196 = vpop.f32.mrb[0].mxu0
    %197 = vdwg.mxu0
    %v198 = vadd.f32 %v130, %v192
    %v199 = vadd.f32 %v131, %v195
    %200 = vst.msk [vmem:[#allocation2] sm:$0xff] %vm71, %v198
    %201 = vst.msk [vmem:[#allocation2 + $0x8] sm:$0xff] %vm71, %v199
    // Predicated region
    $region26: #{tpu_custom_call.1} parent=1 // pred_check
      %p202 = pneg %p22
    $region27: #{tpu_custom_call.1} parent=1 // pred_check_branch
      %204 = sbr.rel (%p202) target = $region29
    $region28: #{tpu_custom_call.1} parent=1 // pred_region
      %v205 = vld [vmem:[#allocation2] sm:$0xff]
      %v206 = vld [vmem:[#allocation2 + $0x8] sm:$0xff]
      %v207 = vld [vmem:[%s4] sm:$0x1]
      %v209 = vlaneseq
      %v210 = vshrl.u32 %v209, 7
      %v211 = vsub.s32 0, %v210
      %v212 = vrot.slane %v207, %v211
      %v214 = vadd.f32 %v205, %v212
      %v215 = vadd.f32 %v206, %v212
      %216 = vst.msk [vmem:[#allocation3] sm:$0xff] %vm71, %v214
      %217 = vst.msk [vmem:[#allocation3 + $0x8] sm:$0xff] %vm71, %v215
    $region29: #{tpu_custom_call.1} parent=1 // pred_fallthru
      _
    // Predicated region
    $region30: #{tpu_custom_call.1} parent=1 // pred_check
      _
    $region31: #{tpu_custom_call.1} parent=1 // pred_check_branch
      %219 = sbr.rel (0) target = $region33
    $region32: #{tpu_custom_call.1} parent=1 // pred_region
      %s221 = ssub.s32 256, 256
      %222 = vsyncadd [#allocation4], %s221
      %s223 = sshll.u32 [#allocation3], 4
      %s224 = int_to_ptr.vmem [resolvable:$true] %s223
      %229 = dma.vmem_to_hbm [thread:$0]  %s224, 256, %s5, [#allocation4], 128, 128, 8
    $region33: #{tpu_custom_call.1} parent=1 // pred_fallthru
      _
    // Predicated region
    $region34: #{tpu_custom_call.1} parent=1 // pred_check
      _
    $region35: #{tpu_custom_call.1} parent=1 // pred_check_branch
      %231 = sbr.rel (0) target = $region37
    $region36: #{tpu_custom_call.1} parent=1 // pred_region
      %232 = dma.done [#allocation4], 256
    $region37: #{tpu_custom_call.1} parent=1 // pred_fallthru
      _
    %233 = vsyncpa [#allocation4], 1

</llo_original>
